<compile_context>
chip_gen: v6e
topology: v6e:2x2x1
jax: 0.10.0
libtpu: 0.0.40
codegen_flags: <defaults>
</compile_context>

<pallas_src>
import functools

import jax
import jax.numpy as jnp
from jax.experimental import pallas as pl
from jax.experimental.pallas import tpu as pltpu


def _round_up(x, m):
    return (x + m - 1) // m * m


def _chip_info():
    """Return (vmem_capacity_bytes, has_multiple_tensorcores), conservatively."""
    vmem_cap, multi_tc = 64 << 20, True          # conservative default (v7x-like)
    try:
        kind = jax.devices()[0].device_kind.lower()
    except Exception:
        kind = ""
    if ("v5 lite" in kind) or ("v5e" in kind) or ("v6" in kind):
        vmem_cap, multi_tc = 128 << 20, False    # v5e / v6e: 1 TC, 128 MiB VMEM
    elif "7" in kind:
        vmem_cap, multi_tc = 64 << 20, True      # v7x: 2 TCs, 64 MiB VMEM per TC
    elif ("v4" in kind) or ("v5p" in kind) or ("v5" in kind):
        vmem_cap, multi_tc = 128 << 20, True
    try:
        cap = getattr(pltpu.get_tpu_info(), "vmem_capacity_bytes", None)
        if cap:
            vmem_cap = min(vmem_cap, int(cap))
    except Exception:
        pass
    return vmem_cap, multi_tc


def _pick_tile(N, S, C, in_itemsize, out_itemsize, ray_tile):
    """Choose ray-tile NT, grid and vmem_limit from chip + dtype-aware sizing."""
    vmem_cap, multi_tc = _chip_info()
    # Double-buffered pipeline budget (leave headroom below physical VMEM).
    budget = min(max(vmem_cap // 2 - (8 << 20), 8 << 20), 56 << 20)
    # Per-ray VMEM bytes: input blocks are lane-padded to 128 lanes; output
    # blocks are sublane-padded; f32 temporaries for the in-kernel relayout+scan.
    per_ray_in = in_itemsize * (_round_up(S * C, 128) + 2 * _round_up(S, 128))
    per_ray_out = out_itemsize * (_round_up(C, 8) + 8 + _round_up(S - 1, 8))
    per_ray_tmp = 4 * (S * C + 14 * S)
    per_ray = 2 * (per_ray_in + per_ray_out) + per_ray_tmp
    nt_cap = max(128, (budget // per_ray) // 128 * 128)

    if N <= nt_cap and N <= ray_tile:
        NT = N                                     # one block covers everything
    else:
        NT = max(128, (min(ray_tile, nt_cap) // 128) * 128)
    grid = pl.cdiv(N, NT)

    if multi_tc:
        # Give both TensorCores work: >= 2 grid steps, even step count if cheap.
        if grid == 1 and N >= 256:
            NT = _round_up(pl.cdiv(N, 2), 128)
        elif grid > 1 and grid % 2 == 1 and pl.cdiv(N, grid + 1) >= 128:
            NT = _round_up(pl.cdiv(N, grid + 1), 128)
        grid = pl.cdiv(N, NT)

    vmem_limit = int(min(max(NT * per_ray + (8 << 20), 24 << 20),
                         vmem_cap - (16 << 20)))
    return NT, grid, vmem_limit


def _ray_marcher_kernel(dmin_ref, dmax_ref, colors_ref, dens_ref, dep_ref,
                        rgb_out_ref, depth_out_ref, w_out_ref, *, white_back):
    # Blocks:
    #   colors_ref (NT, S*C)   dens_ref / dep_ref (NT, S)          [natural order]
    #   rgb_out (C, NT)        depth_out (1, NT)     w_out (S-1, NT)  [lane-dense]
    NT, S = dens_ref.shape
    C = colors_ref.shape[1] // S
    f32 = jnp.float32

    # ---- single relayout to rays-on-lanes (samples on sublanes) --------------
    # Transpose in the input dtype (half the XLU traffic for bf16), upcast after.
    d = jnp.transpose(dep_ref[...]).astype(f32)         # (S, NT)
    dn = jnp.transpose(dens_ref[...]).astype(f32)       # (S, NT)
    colT = jnp.transpose(colors_ref[...]).astype(f32)   # (S*C, NT), row = s*C + c

    # ---- per-interval quantities ---------------------------------------------
    d_lo, d_hi = d[:S - 1, :], d[1:, :]
    deltas = d_hi - d_lo                                 # (S-1, NT)
    depths_mid = (d_hi + d_lo) * 0.5
    dens_mid = (dn[1:, :] + dn[:S - 1, :]) * 0.5

    # softplus(densities_mid - 1); accurate log1p-equivalent tail without
    # relying on a log1p lowering (series branch when 1+e would lose precision).
    x = dens_mid - 1.0
    e = jnp.exp(-jnp.abs(x))
    log1pe = jnp.where(e > 1e-4, jnp.log(1.0 + e), e * (1.0 - 0.5 * e))
    sp = jnp.maximum(x, 0.0) + log1pe
    alpha = 1.0 - jnp.exp(-(sp * deltas))                # (S-1, NT)

    # ---- weights[s] = alpha[s] * prod_{j<s}(1 - alpha[j] + 1e-10) ------------
    # Exclusive cumprod via a full-width Hillis-Steele scan (hoisted ones tile).
    ones_rows = jnp.ones((S, NT), f32)
    t = 1.0 - alpha + 1e-10
    p = t
    k = 1
    while k < S - 1:
        p = p * jnp.concatenate([ones_rows[:k, :], p[:S - 1 - k, :]], axis=0)
        k *= 2
    if S > 2:
        T = jnp.concatenate([ones_rows[:1, :], p[:S - 2, :]], axis=0)
    else:
        T = ones_rows[:1, :]
    w = alpha * T                                        # (S-1, NT)

    # ---- composite depth ------------------------------------------------------
    wtot = jnp.sum(w, axis=0, keepdims=True)                        # (1, NT)
    cdep = jnp.sum(w * depths_mid, axis=0, keepdims=True) / wtot
    cdep = jnp.where(jnp.isnan(cdep), jnp.inf, cdep)                # nan_to_num(inf)
    cdep = jnp.clip(cdep, dmin_ref[0], dmax_ref[0])
    depth_out_ref[...] = cdep.astype(depth_out_ref.dtype)

    # ---- composite rgb --------------------------------------------------------
    #   sum_s w[s]*0.5*(col[s]+col[s+1]) == sum_s 0.5*(w[s-1]+w[s]) * col[s]
    # (w[-1] = w[S-1] = 0), so the flattened (S*C, NT) color tile is consumed
    # with contiguous (C, NT) row slices.
    zrow = jnp.zeros((1, NT), f32)
    wz = jnp.concatenate([zrow, w, zrow], axis=0)        # (S+1, NT)
    whalf = (wz[:-1, :] + wz[1:, :]) * 0.5               # (S, NT)
    rgb = whalf[0:1, :] * colT[0:C, :]
    for s in range(1, S):
        rgb = rgb + whalf[s:s + 1, :] * colT[s * C:(s + 1) * C, :]
    if white_back:
        rgb = rgb + 1.0 - wtot
    rgb = rgb * 2.0 - 1.0                                # (C, NT)

    # ---- lane-dense stores (no in-kernel output transposes) -------------------
    rgb_out_ref[...] = rgb.astype(rgb_out_ref.dtype)
    w_out_ref[...] = w.astype(w_out_ref.dtype)


def mip_ray_marcher2(colors, densities, depths, rendering_options,
                     generate_surface_only=False, ray_tile=8192,
                     depths_sorted=False):
    """Pallas implementation of MipRayMarcher2.forward (clamp_mode='softplus')."""
    assert rendering_options['clamp_mode'] == 'softplus', \
        'MipRayMarcher only supports `clamp_mode`=`softplus`!'
    if generate_surface_only:
        # TODO(synk): argmax+scatter "surface only" branch not implemented in-kernel.
        raise NotImplementedError('generate_surface_only not supported')
    white_back = bool(rendering_options.get('white_back', False))

    B, R, S, C = colors.shape
    assert densities.shape == (B, R, S, 1) and depths.shape == (B, R, S, 1)
    assert S >= 2
    N = B * R
    f32 = jnp.float32
    out_dtype = jnp.result_type(colors.dtype, densities.dtype, depths.dtype)

    # Natural-layout 2-D views: free reshapes, no HBM transpose / pad passes.
    colors2 = colors.reshape(N, S * C)
    dens2 = densities.reshape(N, S)
    dep2 = depths.reshape(N, S)

    # Global clamp bounds for the composite depth.
    if depths_sorted:
        dmin = jnp.min(dep2[:, 0])
        dmax = jnp.max(dep2[:, -1])
    else:
        dmin = jnp.min(dep2)
        dmax = jnp.max(dep2)
    dmin = dmin.astype(f32).reshape(1)
    dmax = dmax.astype(f32).reshape(1)

    in_itemsize = max(colors.dtype.itemsize, densities.dtype.itemsize,
                      depths.dtype.itemsize)
    NT, grid, vmem_limit = _pick_tile(N, S, C, in_itemsize,
                                      jnp.dtype(out_dtype).itemsize, ray_tile)

    kernel = functools.partial(_ray_marcher_kernel, white_back=white_back)
    # Ragged tail (N % NT != 0) is handled by Pallas boundary-block clipping:
    # no full-array jnp.pad copy, garbage tail lanes are never stored.
    rgbT, cdepT, wT = pl.pallas_call(
        kernel,
        grid=(grid,),
        in_specs=[
            pl.BlockSpec(memory_space=pltpu.SMEM),             # dmin scalar
            pl.BlockSpec(memory_space=pltpu.SMEM),             # dmax scalar
            pl.BlockSpec((NT, S * C), lambda i: (i, 0)),       # colors (natural)
            pl.BlockSpec((NT, S), lambda i: (i, 0)),           # densities
            pl.BlockSpec((NT, S), lambda i: (i, 0)),           # depths
        ],
        out_specs=[
            pl.BlockSpec((C, NT), lambda i: (0, i)),           # rgb, lane-dense
            pl.BlockSpec((1, NT), lambda i: (0, i)),           # depth, lane-dense
            pl.BlockSpec((S - 1, NT), lambda i: (0, i)),       # weights, lane-dense
        ],
        out_shape=[
            jax.ShapeDtypeStruct((C, N), out_dtype),
            jax.ShapeDtypeStruct((1, N), out_dtype),
            jax.ShapeDtypeStruct((S - 1, N), out_dtype),
        ],
        compiler_params=pltpu.CompilerParams(
            dimension_semantics=("parallel",),
            vmem_limit_bytes=vmem_limit),
    )(dmin, dmax, colors2, dens2, dep2)

    # Cheap wrapper-side reorder of the small output arrays to PyTorch layout.
    composite_rgb = jnp.transpose(rgbT).reshape(B, R, C)
    composite_depth = cdepT.reshape(B, R, 1)
    weights = jnp.transpose(wT).reshape(B, R, S - 1, 1)
    return composite_rgb, composite_depth, weights


def _reference(colors, densities, depths, rendering_options):
    """Pure-JAX transcription of the PyTorch run_forward (default path)."""
    deltas = depths[:, :, 1:] - depths[:, :, :-1]
    colors_mid = (colors[:, :, :-1] + colors[:, :, 1:]) / 2
    densities_mid = (densities[:, :, :-1] + densities[:, :, 1:]) / 2
    depths_mid = (depths[:, :, :-1] + depths[:, :, 1:]) / 2
    densities_mid = jax.nn.softplus(densities_mid - 1)
    density_delta = densities_mid * deltas
    alpha = 1 - jnp.exp(-density_delta)
    alpha_shifted = jnp.concatenate(
        [jnp.ones_like(alpha[:, :, :1]), 1 - alpha + 1e-10], axis=-2)
    weights = alpha * jnp.cumprod(alpha_shifted, axis=-2)[:, :, :-1]
    composite_rgb = jnp.sum(weights * colors_mid, axis=-2)
    weight_total = weights.sum(2)
    composite_depth = jnp.sum(weights * depths_mid, axis=-2) / weight_total
    composite_depth = jnp.where(jnp.isnan(composite_depth), jnp.inf, composite_depth)
    composite_depth = jnp.clip(composite_depth, jnp.min(depths), jnp.max(depths))
    if rendering_options.get('white_back', False):
        composite_rgb = composite_rgb + 1 - weight_total
    composite_rgb = composite_rgb * 2 - 1
    return composite_rgb, composite_depth, weights


if __name__ == "__main__":
    key = jax.random.PRNGKey(0)
    k1, k2, k3 = jax.random.split(key, 3)
    B, R, S, C = 2, 128, 16, 3
    colors = jax.random.uniform(k1, (B, R, S, C), jnp.float32)
    densities = jax.random.normal(k2, (B, R, S, 1), jnp.float32)
    depths = jnp.sort(
        jax.random.uniform(k3, (B, R, S, 1), jnp.float32, minval=1.0, maxval=3.0),
        axis=2)
    rendering_options = {'clamp_mode': 'softplus', 'white_back': False}

    rgb, depth, weights = mip_ray_marcher2(
        colors, densities, depths, rendering_options, depths_sorted=True)
    jax.block_until_ready((rgb, depth, weights))

    rgb_ref, depth_ref, weights_ref = _reference(colors, densities, depths,
                                                 rendering_options)

    assert rgb.shape == (B, R, C)
    assert depth.shape == (B, R, 1)
    assert weights.shape == (B, R, S - 1, 1)
    assert jnp.allclose(rgb, rgb_ref, atol=2e-5, rtol=2e-5)
    assert jnp.allclose(depth, depth_ref, atol=2e-5, rtol=2e-5)
    assert jnp.allclose(weights, weights_ref, atol=2e-5, rtol=2e-5)
    print("KERNEL_OK")
</pallas_src>

<mosaic_0001>
module attributes {stable_mosaic.version = 11 : i64} {
  func.func @_ray_marcher_kernel(%arg0: i32, %arg1: memref<1xf32, #tpu.memory_space<smem>>, %arg2: memref<1xf32, #tpu.memory_space<smem>>, %arg3: memref<128x48xf32, #tpu.memory_space<vmem>>, %arg4: memref<128x16xf32, #tpu.memory_space<vmem>>, %arg5: memref<128x16xf32, #tpu.memory_space<vmem>>, %arg6: memref<3x128xf32, #tpu.memory_space<vmem>>, %arg7: memref<1x128xf32, #tpu.memory_space<vmem>>, %arg8: memref<15x128xf32, #tpu.memory_space<vmem>>) attributes {dimension_semantics = [#tpu.dimension_semantics<parallel>], iteration_bounds = array<i64: 2>, scalar_prefetch = 0 : i64, scratch_operands = 0 : i64, tpu.core_type = #tpu.core_type<tc>, window_params = [{transform_indices = @transform_0, window_bounds = array<i64: 1>}, {transform_indices = @transform_1, window_bounds = array<i64: 1>}, {transform_indices = @transform_2, window_bounds = array<i64: 128, 48>}, {transform_indices = @transform_3, window_bounds = array<i64: 128, 16>}, {transform_indices = @transform_4, window_bounds = array<i64: 128, 16>}, {transform_indices = @transform_5, window_bounds = array<i64: 3, 128>}, {transform_indices = @transform_6, window_bounds = array<i64: 1, 128>}, {transform_indices = @transform_7, window_bounds = array<i64: 15, 128>}]} {
    %c0 = arith.constant 0 : index
    %c0_0 = arith.constant 0 : index
    %0 = vector.load %arg5[%c0, %c0_0] : memref<128x16xf32, #tpu.memory_space<vmem>>, vector<128x16xf32>
    %1 = tpu.transpose %0, [1, 0] : vector<128x16xf32> -> vector<16x128xf32>
    %c0_1 = arith.constant 0 : index
    %c0_2 = arith.constant 0 : index
    %2 = vector.load %arg4[%c0_1, %c0_2] : memref<128x16xf32, #tpu.memory_space<vmem>>, vector<128x16xf32>
    %3 = tpu.transpose %2, [1, 0] : vector<128x16xf32> -> vector<16x128xf32>
    %c0_3 = arith.constant 0 : index
    %c0_4 = arith.constant 0 : index
    %4 = vector.load %arg3[%c0_3, %c0_4] : memref<128x48xf32, #tpu.memory_space<vmem>>, vector<128x48xf32>
    %5 = tpu.transpose %4, [1, 0] : vector<128x48xf32> -> vector<48x128xf32>
    %6 = vector.extract_strided_slice %1 {offsets = [0, 0], sizes = [15, 128], strides = [1, 1]} : vector<16x128xf32> to vector<15x128xf32>
    %7 = vector.extract_strided_slice %1 {offsets = [1, 0], sizes = [15, 128], strides = [1, 1]} : vector<16x128xf32> to vector<15x128xf32>
    %8 = arith.subf %7, %6 : vector<15x128xf32>
    %9 = arith.addf %7, %6 : vector<15x128xf32>
    %cst = arith.constant 5.000000e-01 : f32
    %10 = vector.broadcast %cst : f32 to vector<15x128xf32>
    %11 = arith.mulf %9, %10 : vector<15x128xf32>
    %12 = vector.extract_strided_slice %3 {offsets = [1, 0], sizes = [15, 128], strides = [1, 1]} : vector<16x128xf32> to vector<15x128xf32>
    %13 = vector.extract_strided_slice %3 {offsets = [0, 0], sizes = [15, 128], strides = [1, 1]} : vector<16x128xf32> to vector<15x128xf32>
    %14 = arith.addf %12, %13 : vector<15x128xf32>
    %cst_5 = arith.constant 5.000000e-01 : f32
    %15 = vector.broadcast %cst_5 : f32 to vector<15x128xf32>
    %16 = arith.mulf %14, %15 : vector<15x128xf32>
    %cst_6 = arith.constant 1.000000e+00 : f32
    %17 = vector.broadcast %cst_6 : f32 to vector<15x128xf32>
    %18 = arith.subf %16, %17 : vector<15x128xf32>
    %19 = math.absf %18 : vector<15x128xf32>
    %cst_7 = arith.constant 0.000000e+00 : f32
    %20 = vector.broadcast %cst_7 : f32 to vector<15x128xf32>
    %21 = arith.subf %20, %19 : vector<15x128xf32>
    %22 = math.exp %21 : vector<15x128xf32>
    %cst_8 = arith.constant 9.99999974E-5 : f32
    %23 = vector.broadcast %cst_8 : f32 to vector<15x128xf32>
    %24 = arith.cmpf ogt, %22, %23 : vector<15x128xf32>
    %cst_9 = arith.constant 1.000000e+00 : f32
    %25 = vector.broadcast %cst_9 : f32 to vector<15x128xf32>
    %26 = arith.addf %25, %22 : vector<15x128xf32>
    %27 = math.log %26 : vector<15x128xf32>
    %cst_10 = arith.constant 5.000000e-01 : f32
    %28 = vector.broadcast %cst_10 : f32 to vector<15x128xf32>
    %29 = arith.mulf %28, %22 : vector<15x128xf32>
    %cst_11 = arith.constant 1.000000e+00 : f32
    %30 = vector.broadcast %cst_11 : f32 to vector<15x128xf32>
    %31 = arith.subf %30, %29 : vector<15x128xf32>
    %32 = arith.mulf %22, %31 : vector<15x128xf32>
    %33 = arith.select %24, %27, %32 : vector<15x128xi1>, vector<15x128xf32>
    %cst_12 = arith.constant 0.000000e+00 : f32
    %34 = vector.broadcast %cst_12 : f32 to vector<15x128xf32>
    %35 = arith.maximumf %18, %34 : vector<15x128xf32>
    %36 = arith.addf %35, %33 : vector<15x128xf32>
    %37 = arith.mulf %36, %8 : vector<15x128xf32>
    %cst_13 = arith.constant 0.000000e+00 : f32
    %38 = vector.broadcast %cst_13 : f32 to vector<15x128xf32>
    %39 = arith.subf %38, %37 : vector<15x128xf32>
    %40 = math.exp %39 : vector<15x128xf32>
    %cst_14 = arith.constant 1.000000e+00 : f32
    %41 = vector.broadcast %cst_14 : f32 to vector<15x128xf32>
    %42 = arith.subf %41, %40 : vector<15x128xf32>
    %cst_15 = arith.constant 1.000000e+00 : f32
    %43 = vector.broadcast %cst_15 : f32 to vector<16x128xf32>
    %cst_16 = arith.constant 1.000000e+00 : f32
    %44 = vector.broadcast %cst_16 : f32 to vector<15x128xf32>
    %45 = arith.subf %44, %42 : vector<15x128xf32>
    %cst_17 = arith.constant 1.000000e-10 : f32
    %46 = vector.broadcast %cst_17 : f32 to vector<15x128xf32>
    %47 = arith.addf %45, %46 : vector<15x128xf32>
    %48 = vector.extract_strided_slice %43 {offsets = [0, 0], sizes = [1, 128], strides = [1, 1]} : vector<16x128xf32> to vector<1x128xf32>
    %49 = vector.extract_strided_slice %47 {offsets = [0, 0], sizes = [14, 128], strides = [1, 1]} : vector<15x128xf32> to vector<14x128xf32>
    %50 = tpu.concatenate %48, %49 in 0 : vector<1x128xf32>, vector<14x128xf32> -> vector<15x128xf32>
    %51 = arith.mulf %47, %50 : vector<15x128xf32>
    %52 = vector.extract_strided_slice %43 {offsets = [0, 0], sizes = [2, 128], strides = [1, 1]} : vector<16x128xf32> to vector<2x128xf32>
    %53 = vector.extract_strided_slice %51 {offsets = [0, 0], sizes = [13, 128], strides = [1, 1]} : vector<15x128xf32> to vector<13x128xf32>
    %54 = tpu.concatenate %52, %53 in 0 : vector<2x128xf32>, vector<13x128xf32> -> vector<15x128xf32>
    %55 = arith.mulf %51, %54 : vector<15x128xf32>
    %56 = vector.extract_strided_slice %43 {offsets = [0, 0], sizes = [4, 128], strides = [1, 1]} : vector<16x128xf32> to vector<4x128xf32>
    %57 = vector.extract_strided_slice %55 {offsets = [0, 0], sizes = [11, 128], strides = [1, 1]} : vector<15x128xf32> to vector<11x128xf32>
    %58 = tpu.concatenate %56, %57 in 0 : vector<4x128xf32>, vector<11x128xf32> -> vector<15x128xf32>
    %59 = arith.mulf %55, %58 : vector<15x128xf32>
    %60 = vector.extract_strided_slice %43 {offsets = [0, 0], sizes = [8, 128], strides = [1, 1]} : vector<16x128xf32> to vector<8x128xf32>
    %61 = vector.extract_strided_slice %59 {offsets = [0, 0], sizes = [7, 128], strides = [1, 1]} : vector<15x128xf32> to vector<7x128xf32>
    %62 = tpu.concatenate %60, %61 in 0 : vector<8x128xf32>, vector<7x128xf32> -> vector<15x128xf32>
    %63 = arith.mulf %59, %62 : vector<15x128xf32>
    %64 = vector.extract_strided_slice %43 {offsets = [0, 0], sizes = [1, 128], strides = [1, 1]} : vector<16x128xf32> to vector<1x128xf32>
    %65 = vector.extract_strided_slice %63 {offsets = [0, 0], sizes = [14, 128], strides = [1, 1]} : vector<15x128xf32> to vector<14x128xf32>
    %66 = tpu.concatenate %64, %65 in 0 : vector<1x128xf32>, vector<14x128xf32> -> vector<15x128xf32>
    %67 = arith.mulf %42, %66 : vector<15x128xf32>
    %cst_18 = arith.constant dense<0.000000e+00> : vector<128xf32>
    %68 = vector.multi_reduction <add>, %67, %cst_18 [0] : vector<15x128xf32> to vector<128xf32>
    %69 = vector.shape_cast %68 : vector<128xf32> to vector<1x128xf32>
    %70 = arith.mulf %67, %11 : vector<15x128xf32>
    %cst_19 = arith.constant dense<0.000000e+00> : vector<128xf32>
    %71 = vector.multi_reduction <add>, %70, %cst_19 [0] : vector<15x128xf32> to vector<128xf32>
    %72 = vector.shape_cast %71 : vector<128xf32> to vector<1x128xf32>
    %73 = arith.divf %72, %69 : vector<1x128xf32>
    %74 = arith.cmpf one, %73, %73 : vector<1x128xf32>
    %cst_20 = arith.constant 0x7F800000 : f32
    %75 = vector.broadcast %cst_20 : f32 to vector<1x128xf32>
    %76 = arith.select %74, %75, %73 : vector<1x128xi1>, vector<1x128xf32>
    %c0_21 = arith.constant 0 : index
    %77 = memref.load %arg1[%c0_21] : memref<1xf32, #tpu.memory_space<smem>>
    %c0_22 = arith.constant 0 : index
    %78 = memref.load %arg2[%c0_22] : memref<1xf32, #tpu.memory_space<smem>>
    %79 = vector.broadcast %77 : f32 to vector<1x128xf32>
    %80 = arith.maximumf %79, %76 : vector<1x128xf32>
    %81 = vector.broadcast %78 : f32 to vector<1x128xf32>
    %82 = arith.minimumf %81, %80 : vector<1x128xf32>
    %c0_23 = arith.constant 0 : index
    %c0_24 = arith.constant 0 : index
    %83 = vector.load %arg7[%c0_23, %c0_24] : memref<1x128xf32, #tpu.memory_space<vmem>>, vector<1x128xf32>
    tpu.vector_store %arg7[%c0_23, %c0_24], %82 {strides = array<i32>} : memref<1x128xf32, #tpu.memory_space<vmem>>, vector<1x128xf32>,
    %cst_25 = arith.constant 0.000000e+00 : f32
    %84 = vector.broadcast %cst_25 : f32 to vector<1x128xf32>
    %85 = tpu.concatenate %84, %67, %84 in 0 : vector<1x128xf32>, vector<15x128xf32>, vector<1x128xf32> -> vector<17x128xf32>
    %86 = vector.extract_strided_slice %85 {offsets = [0, 0], sizes = [16, 128], strides = [1, 1]} : vector<17x128xf32> to vector<16x128xf32>
    %87 = vector.extract_strided_slice %85 {offsets = [1, 0], sizes = [16, 128], strides = [1, 1]} : vector<17x128xf32> to vector<16x128xf32>
    %88 = arith.addf %86, %87 : vector<16x128xf32>
    %cst_26 = arith.constant 5.000000e-01 : f32
    %89 = vector.broadcast %cst_26 : f32 to vector<16x128xf32>
    %90 = arith.mulf %88, %89 : vector<16x128xf32>
    %91 = vector.extract_strided_slice %90 {offsets = [0, 0], sizes = [1, 128], strides = [1, 1]} : vector<16x128xf32> to vector<1x128xf32>
    %92 = vector.extract_strided_slice %5 {offsets = [0, 0], sizes = [3, 128], strides = [1, 1]} : vector<48x128xf32> to vector<3x128xf32>
    %93 = vector.broadcast %91 : vector<1x128xf32> to vector<3x128xf32>
    %94 = arith.mulf %93, %92 : vector<3x128xf32>
    %95 = vector.extract_strided_slice %90 {offsets = [1, 0], sizes = [1, 128], strides = [1, 1]} : vector<16x128xf32> to vector<1x128xf32>
    %96 = vector.extract_strided_slice %5 {offsets = [3, 0], sizes = [3, 128], strides = [1, 1]} : vector<48x128xf32> to vector<3x128xf32>
    %97 = vector.broadcast %95 : vector<1x128xf32> to vector<3x128xf32>
    %98 = arith.mulf %97, %96 : vector<3x128xf32>
    %99 = arith.addf %94, %98 : vector<3x128xf32>
    %100 = vector.extract_strided_slice %90 {offsets = [2, 0], sizes = [1, 128], strides = [1, 1]} : vector<16x128xf32> to vector<1x128xf32>
    %101 = vector.extract_strided_slice %5 {offsets = [6, 0], sizes = [3, 128], strides = [1, 1]} : vector<48x128xf32> to vector<3x128xf32>
    %102 = vector.broadcast %100 : vector<1x128xf32> to vector<3x128xf32>
    %103 = arith.mulf %102, %101 : vector<3x128xf32>
    %104 = arith.addf %99, %103 : vector<3x128xf32>
    %105 = vector.extract_strided_slice %90 {offsets = [3, 0], sizes = [1, 128], strides = [1, 1]} : vector<16x128xf32> to vector<1x128xf32>
    %106 = vector.extract_strided_slice %5 {offsets = [9, 0], sizes = [3, 128], strides = [1, 1]} : vector<48x128xf32> to vector<3x128xf32>
    %107 = vector.broadcast %105 : vector<1x128xf32> to vector<3x128xf32>
    %108 = arith.mulf %107, %106 : vector<3x128xf32>
    %109 = arith.addf %104, %108 : vector<3x128xf32>
    %110 = vector.extract_strided_slice %90 {offsets = [4, 0], sizes = [1, 128], strides = [1, 1]} : vector<16x128xf32> to vector<1x128xf32>
    %111 = vector.extract_strided_slice %5 {offsets = [12, 0], sizes = [3, 128], strides = [1, 1]} : vector<48x128xf32> to vector<3x128xf32>
    %112 = vector.broadcast %110 : vector<1x128xf32> to vector<3x128xf32>
    %113 = arith.mulf %112, %111 : vector<3x128xf32>
    %114 = arith.addf %109, %113 : vector<3x128xf32>
    %115 = vector.extract_strided_slice %90 {offsets = [5, 0], sizes = [1, 128], strides = [1, 1]} : vector<16x128xf32> to vector<1x128xf32>
    %116 = vector.extract_strided_slice %5 {offsets = [15, 0], sizes = [3, 128], strides = [1, 1]} : vector<48x128xf32> to vector<3x128xf32>
    %117 = vector.broadcast %115 : vector<1x128xf32> to vector<3x128xf32>
    %118 = arith.mulf %117, %116 : vector<3x128xf32>
    %119 = arith.addf %114, %118 : vector<3x128xf32>
    %120 = vector.extract_strided_slice %90 {offsets = [6, 0], sizes = [1, 128], strides = [1, 1]} : vector<16x128xf32> to vector<1x128xf32>
    %121 = vector.extract_strided_slice %5 {offsets = [18, 0], sizes = [3, 128], strides = [1, 1]} : vector<48x128xf32> to vector<3x128xf32>
    %122 = vector.broadcast %120 : vector<1x128xf32> to vector<3x128xf32>
    %123 = arith.mulf %122, %121 : vector<3x128xf32>
    %124 = arith.addf %119, %123 : vector<3x128xf32>
    %125 = vector.extract_strided_slice %90 {offsets = [7, 0], sizes = [1, 128], strides = [1, 1]} : vector<16x128xf32> to vector<1x128xf32>
    %126 = vector.extract_strided_slice %5 {offsets = [21, 0], sizes = [3, 128], strides = [1, 1]} : vector<48x128xf32> to vector<3x128xf32>
    %127 = vector.broadcast %125 : vector<1x128xf32> to vector<3x128xf32>
    %128 = arith.mulf %127, %126 : vector<3x128xf32>
    %129 = arith.addf %124, %128 : vector<3x128xf32>
    %130 = vector.extract_strided_slice %90 {offsets = [8, 0], sizes = [1, 128], strides = [1, 1]} : vector<16x128xf32> to vector<1x128xf32>
    %131 = vector.extract_strided_slice %5 {offsets = [24, 0], sizes = [3, 128], strides = [1, 1]} : vector<48x128xf32> to vector<3x128xf32>
    %132 = vector.broadcast %130 : vector<1x128xf32> to vector<3x128xf32>
    %133 = arith.mulf %132, %131 : vector<3x128xf32>
    %134 = arith.addf %129, %133 : vector<3x128xf32>
    %135 = vector.extract_strided_slice %90 {offsets = [9, 0], sizes = [1, 128], strides = [1, 1]} : vector<16x128xf32> to vector<1x128xf32>
    %136 = vector.extract_strided_slice %5 {offsets = [27, 0], sizes = [3, 128], strides = [1, 1]} : vector<48x128xf32> to vector<3x128xf32>
    %137 = vector.broadcast %135 : vector<1x128xf32> to vector<3x128xf32>
    %138 = arith.mulf %137, %136 : vector<3x128xf32>
    %139 = arith.addf %134, %138 : vector<3x128xf32>
    %140 = vector.extract_strided_slice %90 {offsets = [10, 0], sizes = [1, 128], strides = [1, 1]} : vector<16x128xf32> to vector<1x128xf32>
    %141 = vector.extract_strided_slice %5 {offsets = [30, 0], sizes = [3, 128], strides = [1, 1]} : vector<48x128xf32> to vector<3x128xf32>
    %142 = vector.broadcast %140 : vector<1x128xf32> to vector<3x128xf32>
    %143 = arith.mulf %142, %141 : vector<3x128xf32>
    %144 = arith.addf %139, %143 : vector<3x128xf32>
    %145 = vector.extract_strided_slice %90 {offsets = [11, 0], sizes = [1, 128], strides = [1, 1]} : vector<16x128xf32> to vector<1x128xf32>
    %146 = vector.extract_strided_slice %5 {offsets = [33, 0], sizes = [3, 128], strides = [1, 1]} : vector<48x128xf32> to vector<3x128xf32>
    %147 = vector.broadcast %145 : vector<1x128xf32> to vector<3x128xf32>
    %148 = arith.mulf %147, %146 : vector<3x128xf32>
    %149 = arith.addf %144, %148 : vector<3x128xf32>
    %150 = vector.extract_strided_slice %90 {offsets = [12, 0], sizes = [1, 128], strides = [1, 1]} : vector<16x128xf32> to vector<1x128xf32>
    %151 = vector.extract_strided_slice %5 {offsets = [36, 0], sizes = [3, 128], strides = [1, 1]} : vector<48x128xf32> to vector<3x128xf32>
    %152 = vector.broadcast %150 : vector<1x128xf32> to vector<3x128xf32>
    %153 = arith.mulf %152, %151 : vector<3x128xf32>
    %154 = arith.addf %149, %153 : vector<3x128xf32>
    %155 = vector.extract_strided_slice %90 {offsets = [13, 0], sizes = [1, 128], strides = [1, 1]} : vector<16x128xf32> to vector<1x128xf32>
    %156 = vector.extract_strided_slice %5 {offsets = [39, 0], sizes = [3, 128], strides = [1, 1]} : vector<48x128xf32> to vector<3x128xf32>
    %157 = vector.broadcast %155 : vector<1x128xf32> to vector<3x128xf32>
    %158 = arith.mulf %157, %156 : vector<3x128xf32>
    %159 = arith.addf %154, %158 : vector<3x128xf32>
    %160 = vector.extract_strided_slice %90 {offsets = [14, 0], sizes = [1, 128], strides = [1, 1]} : vector<16x128xf32> to vector<1x128xf32>
    %161 = vector.extract_strided_slice %5 {offsets = [42, 0], sizes = [3, 128], strides = [1, 1]} : vector<48x128xf32> to vector<3x128xf32>
    %162 = vector.broadcast %160 : vector<1x128xf32> to vector<3x128xf32>
    %163 = arith.mulf %162, %161 : vector<3x128xf32>
    %164 = arith.addf %159, %163 : vector<3x128xf32>
    %165 = vector.extract_strided_slice %90 {offsets = [15, 0], sizes = [1, 128], strides = [1, 1]} : vector<16x128xf32> to vector<1x128xf32>
    %166 = vector.extract_strided_slice %5 {offsets = [45, 0], sizes = [3, 128], strides = [1, 1]} : vector<48x128xf32> to vector<3x128xf32>
    %167 = vector.broadcast %165 : vector<1x128xf32> to vector<3x128xf32>
    %168 = arith.mulf %167, %166 : vector<3x128xf32>
    %169 = arith.addf %164, %168 : vector<3x128xf32>
    %cst_27 = arith.constant 2.000000e+00 : f32
    %170 = vector.broadcast %cst_27 : f32 to vector<3x128xf32>
    %171 = arith.mulf %169, %170 : vector<3x128xf32>
    %cst_28 = arith.constant 1.000000e+00 : f32
    %172 = vector.broadcast %cst_28 : f32 to vector<3x128xf32>
    %173 = arith.subf %171, %172 : vector<3x128xf32>
    %c0_29 = arith.constant 0 : index
    %c0_30 = arith.constant 0 : index
    %174 = vector.load %arg6[%c0_29, %c0_30] : memref<3x128xf32, #tpu.memory_space<vmem>>, vector<3x128xf32>
    tpu.vector_store %arg6[%c0_29, %c0_30], %173 {strides = array<i32>} : memref<3x128xf32, #tpu.memory_space<vmem>>, vector<3x128xf32>,
    %c0_31 = arith.constant 0 : index
    %c0_32 = arith.constant 0 : index
    %175 = vector.load %arg8[%c0_31, %c0_32] : memref<15x128xf32, #tpu.memory_space<vmem>>, vector<15x128xf32>
    tpu.vector_store %arg8[%c0_31, %c0_32], %67 {strides = array<i32>} : memref<15x128xf32, #tpu.memory_space<vmem>>, vector<15x128xf32>,
    return
  }
  func.func @transform_0(%arg0: i32) -> i32 {
    %c0_i32 = arith.constant 0 : i32
    %c0_i32_0 = arith.constant 0 : i32
    return %c0_i32 : i32
  }
  func.func @transform_1(%arg0: i32) -> i32 {
    %c0_i32 = arith.constant 0 : i32
    %c0_i32_0 = arith.constant 0 : i32
    return %c0_i32 : i32
  }
  func.func @transform_2(%arg0: i32) -> (i32, i32) {
    %c0_i32 = arith.constant 0 : i32
    %c0_i32_0 = arith.constant 0 : i32
    return %arg0, %c0_i32 : i32, i32
  }
  func.func @transform_3(%arg0: i32) -> (i32, i32) {
    %c0_i32 = arith.constant 0 : i32
    %c0_i32_0 = arith.constant 0 : i32
    return %arg0, %c0_i32 : i32, i32
  }
  func.func @transform_4(%arg0: i32) -> (i32, i32) {
    %c0_i32 = arith.constant 0 : i32
    %c0_i32_0 = arith.constant 0 : i32
    return %arg0, %c0_i32 : i32, i32
  }
  func.func @transform_5(%arg0: i32) -> (i32, i32) {
    %c0_i32 = arith.constant 0 : i32
    %c0_i32_0 = arith.constant 0 : i32
    return %c0_i32, %arg0 : i32, i32
  }
  func.func @transform_6(%arg0: i32) -> (i32, i32) {
    %c0_i32 = arith.constant 0 : i32
    %c0_i32_0 = arith.constant 0 : i32
    return %c0_i32, %arg0 : i32, i32
  }
  func.func @transform_7(%arg0: i32) -> (i32, i32) {
    %c0_i32 = arith.constant 0 : i32
    %c0_i32_0 = arith.constant 0 : i32
    return %c0_i32, %arg0 : i32, i32
  }
}

</mosaic_0001>

<llo_original>
// kernel: tpu_custom_call.1
$region0: #{tpu_custom_call.1}
  #allocation0 [shape = 'u32[]', space=smem, size = 0x4, offset = 0x4, fixed_abs, tag = 'smem constant byte address 0x4 - core index']
  #allocation1 [shape = 'u32[144,128]{1,0:T(1,128)}', space=vmem, size = 0x12000, scoped, tag = 'internal scratch']
  #allocation2 [shape = 'f32[1]{0:T(128)S(6)}', space=smem, size = 0x200, scoped, tag = 'scoped memory for tpu_custom_call.1']
  #allocation3 [shape = 'f32[1]{0:T(128)S(6)}', space=smem, size = 0x200, scoped, tag = 'scoped memory for tpu_custom_call.1']
  %s0 = inlined_call_operand.<no memory space> [shape: f32[1], index: 0, kind: input, shape index: {}]
  %s1 = inlined_call_operand.<no memory space> [shape: f32[1], index: 1, kind: input, shape index: {}]
  %s2 = inlined_call_operand.vmem [shape: f32[256,48], index: 2, kind: input, shape index: {}]
  %s3 = inlined_call_operand.vmem [shape: f32[256,16], index: 3, kind: input, shape index: {}]
  %s4 = inlined_call_operand.vmem [shape: f32[256,16], index: 4, kind: input, shape index: {}]
  %s5 = inlined_call_operand.hbm [shape: f32[3,256], index: 5, kind: output, shape index: {0}]
  %s6 = inlined_call_operand.hbm [shape: f32[1,256], index: 6, kind: output, shape index: {1}]
  %s7 = inlined_call_operand.hbm [shape: f32[15,256], index: 7, kind: output, shape index: {2}]
  %8 = xla_tuple %s5, %s6, %s7
  %s9 = sld [smem:[#allocation0]]
  $region69: #{tpu_custom_call.1} parent=0
    _
  %s11 = ssub.s32 1, %s9
  %s12 = scalar_select 0, %s11, %s9
  %13 = sst [smem:[#allocation2]] %s0
  %14 = sst [smem:[#allocation3]] %s1
  $region1: #{tpu_custom_call.1} parent=0
    #allocation4 [shape = 'u8[4096]{0}', space=vmem, size = 0x1000, scoped, tag = 'output window, operand 0']
    #allocation5 [shape = 's32[2]{0}', space=sflag, size = 0x8, scoped, tag = 'scoped memory for tpu_custom_call.1']
    #allocation6 [shape = 'u8[1024]{0}', space=vmem, size = 0x400, scoped, tag = 'output window, operand 1']
    #allocation7 [shape = 's32[2]{0}', space=sflag, size = 0x8, scoped, tag = 'scoped memory for tpu_custom_call.1']
    #allocation8 [shape = 'u8[16384]{0}', space=vmem, size = 0x4000, scoped, tag = 'output window, operand 2']
    %15 = vsyncpa [#allocation5], 0
    %s16 = scalar_lea.sflag [#allocation5], 1
    %17 = vsyncpa %s16, 0
    %18 = vsyncpa [#allocation7], 0
    %s19 = scalar_lea.sflag [#allocation7], 1
    %20 = vsyncpa %s19, 0
    loop: start=0, step=1, limit=4
    $region2: #{tpu_custom_call.1} parent=1 // loop_pre_header
      _
    $region3: #{tpu_custom_call.1} parent=1 // loop_header
      %s22 = sphi 0, %s26
      %p23 = scmp.ge.s32.totalorder %s22, 4
      %s30 = sphi 0, %s30
      %s32 = sphi 0, %s30
      %s33 = sphi 0, %s32
      %s47 = sphi 0, %s33
      %s51 = sphi 0, %s51
      %s53 = sphi 0, %s51
      %s54 = sphi 0, %s53
      %s68 = sphi 0, %s54
      %s74 = sphi 0, %s76
      %s77 = sphi 0, %s74
      %s78 = sphi 0, %s77
      %s94 = sphi 0, %s78
      %s100 = sphi 0, %s102
      %s103 = sphi 0, %s100
      %s104 = sphi 0, %s103
      %s120 = sphi 0, %s104
      %s126 = sphi 0, %s128
      %s129 = sphi 0, %s126
      %s130 = sphi 0, %s129
      %s146 = sphi 0, %s130
      %s152 = sphi 0, %s154
      %s155 = sphi 0, %s152
      %s156 = sphi 0, %s155
      %s172 = sphi 0, %s156
      %s178 = sphi 0, %s180
      %s181 = sphi 0, %s178
      %s182 = sphi 0, %s181
      %s198 = sphi 0, %s182
      %s204 = sphi 0, %s206
      %s207 = sphi 0, %s204
      %s208 = sphi 0, %s207
      %s224 = sphi 0, %s208
    $region4: #{tpu_custom_call.1} parent=1 // loop_header_branch
      %25 = sbr.rel (%p23) target = $region8
    $region5: #{tpu_custom_call.1} parent=1 // loop_body
      %s27 = ssub.s32 %s22, 1
      %s28 = ssub.s32 %s22, 2
      %s29 = sadd.s32 %s22, 1
      %s31 = sadd.s32 %s30, 1
      %p34 = scmp.eq.s32.totalorder %s22, 1
      %p35 = scmp.ne.s32.totalorder %s30, %s32
      %p36 = scmp.eq.s32.totalorder %s22, 0
      %p37 = por %p35, %p36
      %p38 = scmp.ne.s32.totalorder %s30, %s32
      %p39 = scmp.eq.s32.totalorder %s27, 1
      %p40 = por %p38, %p39
      %p41 = scmp.ne.s32.totalorder %s32, %s33
      %p42 = scmp.eq.s32.totalorder %s27, 0
      %p43 = por %p41, %p42
      %p44 = scmp.ne.s32.totalorder %s32, %s33
      %p45 = scmp.eq.s32.totalorder %s28, 1
      %p46 = por %p44, %p45
      %p48 = scmp.ne.s32.totalorder %s33, %s47
      %p49 = scmp.eq.s32.totalorder %s28, 0
      %p50 = por %p48, %p49
      %s52 = sadd.s32 %s51, 1
      %p55 = scmp.eq.s32.totalorder %s22, 1
      %p56 = scmp.ne.s32.totalorder %s51, %s53
      %p57 = scmp.eq.s32.totalorder %s22, 0
      %p58 = por %p56, %p57
      %p59 = scmp.ne.s32.totalorder %s51, %s53
      %p60 = scmp.eq.s32.totalorder %s27, 1
      %p61 = por %p59, %p60
      %p62 = scmp.ne.s32.totalorder %s53, %s54
      %p63 = scmp.eq.s32.totalorder %s27, 0
      %p64 = por %p62, %p63
      %p65 = scmp.ne.s32.totalorder %s53, %s54
      %p66 = scmp.eq.s32.totalorder %s28, 1
      %p67 = por %p65, %p66
      %p69 = scmp.ne.s32.totalorder %s54, %s68
      %p70 = scmp.eq.s32.totalorder %s28, 0
      %p71 = por %p69, %p70
      %s72 = ssub.s32 %s22, %s29
      %p73 = scmp.eq.s32.totalorder %s72, 0
      %s75 = sadd.s32 %s74, 1
      %s76 = scalar_select %p73, %s74, %s75
      %p79 = pneg %p73
      %p80 = scmp.eq.s32.totalorder %s22, 1
      %p81 = por %p79, %p80
      %p82 = scmp.ne.s32.totalorder %s74, %s77
      %p83 = scmp.eq.s32.totalorder %s22, 0
      %p84 = por %p82, %p83
      %p85 = scmp.ne.s32.totalorder %s74, %s77
      %p86 = scmp.eq.s32.totalorder %s27, 1
      %p87 = por %p85, %p86
      %p88 = scmp.ne.s32.totalorder %s77, %s78
      %p89 = scmp.eq.s32.totalorder %s27, 0
      %p90 = por %p88, %p89
      %p91 = scmp.ne.s32.totalorder %s77, %s78
      %p92 = scmp.eq.s32.totalorder %s28, 1
      %p93 = por %p91, %p92
      %p95 = scmp.ne.s32.totalorder %s78, %s94
      %p96 = scmp.eq.s32.totalorder %s28, 0
      %p97 = por %p95, %p96
      %s98 = ssub.s32 %s22, %s29
      %p99 = scmp.eq.s32.totalorder %s98, 0
      %s101 = sadd.s32 %s100, 1
      %s102 = scalar_select %p99, %s100, %s101
      %p105 = pneg %p99
      %p106 = scmp.eq.s32.totalorder %s22, 1
      %p107 = por %p105, %p106
      %p108 = scmp.ne.s32.totalorder %s100, %s103
      %p109 = scmp.eq.s32.totalorder %s22, 0
      %p110 = por %p108, %p109
      %p111 = scmp.ne.s32.totalorder %s100, %s103
      %p112 = scmp.eq.s32.totalorder %s27, 1
      %p113 = por %p111, %p112
      %p114 = scmp.ne.s32.totalorder %s103, %s104
      %p115 = scmp.eq.s32.totalorder %s27, 0
      %p116 = por %p114, %p115
      %p117 = scmp.ne.s32.totalorder %s103, %s104
      %p118 = scmp.eq.s32.totalorder %s28, 1
      %p119 = por %p117, %p118
      %p121 = scmp.ne.s32.totalorder %s104, %s120
      %p122 = scmp.eq.s32.totalorder %s28, 0
      %p123 = por %p121, %p122
      %s124 = ssub.s32 %s22, %s29
      %p125 = scmp.eq.s32.totalorder %s124, 0
      %s127 = sadd.s32 %s126, 1
      %s128 = scalar_select %p125, %s126, %s127
      %p131 = pneg %p125
      %p132 = scmp.eq.s32.totalorder %s22, 1
      %p133 = por %p131, %p132
      %p134 = scmp.ne.s32.totalorder %s126, %s129
      %p135 = scmp.eq.s32.totalorder %s22, 0
      %p136 = por %p134, %p135
      %p137 = scmp.ne.s32.totalorder %s126, %s129
      %p138 = scmp.eq.s32.totalorder %s27, 1
      %p139 = por %p137, %p138
      %p140 = scmp.ne.s32.totalorder %s129, %s130
      %p141 = scmp.eq.s32.totalorder %s27, 0
      %p142 = por %p140, %p141
      %p143 = scmp.ne.s32.totalorder %s129, %s130
      %p144 = scmp.eq.s32.totalorder %s28, 1
      %p145 = por %p143, %p144
      %p147 = scmp.ne.s32.totalorder %s130, %s146
      %p148 = scmp.eq.s32.totalorder %s28, 0
      %p149 = por %p147, %p148
      %s150 = ssub.s32 %s22, %s29
      %p151 = scmp.eq.s32.totalorder %s150, 0
      %s153 = sadd.s32 %s152, 1
      %s154 = scalar_select %p151, %s152, %s153
      %p157 = pneg %p151
      %p158 = scmp.eq.s32.totalorder %s22, 1
      %p159 = por %p157, %p158
      %p160 = scmp.ne.s32.totalorder %s152, %s155
      %p161 = scmp.eq.s32.totalorder %s22, 0
      %p162 = por %p160, %p161
      %p163 = scmp.ne.s32.totalorder %s152, %s155
      %p164 = scmp.eq.s32.totalorder %s27, 1
      %p165 = por %p163, %p164
      %p166 = scmp.ne.s32.totalorder %s155, %s156
      %p167 = scmp.eq.s32.totalorder %s27, 0
      %p168 = por %p166, %p167
      %p169 = scmp.ne.s32.totalorder %s155, %s156
      %p170 = scmp.eq.s32.totalorder %s28, 1
      %p171 = por %p169, %p170
      %p173 = scmp.ne.s32.totalorder %s156, %s172
      %p174 = scmp.eq.s32.totalorder %s28, 0
      %p175 = por %p173, %p174
      %s176 = ssub.s32 %s22, %s29
      %p177 = scmp.eq.s32.totalorder %s176, 0
      %s179 = sadd.s32 %s178, 1
      %s180 = scalar_select %p177, %s178, %s179
      %p183 = pneg %p177
      %p184 = scmp.eq.s32.totalorder %s22, 1
      %p185 = por %p183, %p184
      %p186 = scmp.ne.s32.totalorder %s178, %s181
      %p187 = scmp.eq.s32.totalorder %s22, 0
      %p188 = por %p186, %p187
      %p189 = scmp.ne.s32.totalorder %s178, %s181
      %p190 = scmp.eq.s32.totalorder %s27, 1
      %p191 = por %p189, %p190
      %p192 = scmp.ne.s32.totalorder %s181, %s182
      %p193 = scmp.eq.s32.totalorder %s27, 0
      %p194 = por %p192, %p193
      %p195 = scmp.ne.s32.totalorder %s181, %s182
      %p196 = scmp.eq.s32.totalorder %s28, 1
      %p197 = por %p195, %p196
      %p199 = scmp.ne.s32.totalorder %s182, %s198
      %p200 = scmp.eq.s32.totalorder %s28, 0
      %p201 = por %p199, %p200
      %s202 = ssub.s32 %s22, %s29
      %p203 = scmp.eq.s32.totalorder %s202, 0
      %s205 = sadd.s32 %s204, 1
      %s206 = scalar_select %p203, %s204, %s205
      %p209 = pneg %p203
      %p210 = scmp.eq.s32.totalorder %s22, 1
      %p211 = por %p209, %p210
      %p212 = scmp.ne.s32.totalorder %s204, %s207
      %p213 = scmp.eq.s32.totalorder %s22, 0
      %p214 = por %p212, %p213
      %p215 = scmp.ne.s32.totalorder %s204, %s207
      %p216 = scmp.eq.s32.totalorder %s27, 1
      %p217 = por %p215, %p216
      %p218 = scmp.ne.s32.totalorder %s207, %s208
      %p219 = scmp.eq.s32.totalorder %s27, 0
      %p220 = por %p218, %p219
      %p221 = scmp.ne.s32.totalorder %s207, %s208
      %p222 = scmp.eq.s32.totalorder %s28, 1
      %p223 = por %p221, %p222
      %p225 = scmp.ne.s32.totalorder %s208, %s224
      %p226 = scmp.eq.s32.totalorder %s28, 0
      %p227 = por %p225, %p226
      %p228 = scmp.le.s32.totalorder 1, %s22
      %p229 = scmp.lt.s32.totalorder %s22, 3
      %p230 = pnand %p228, %p229
      %p231 = pneg %p230
      // Predicated region
      $region9: #{tpu_custom_call.1} parent=5 // pred_check
        _
      $region10: #{tpu_custom_call.1} parent=5 // pred_check_branch
        %233 = sbr.rel (%p230) target = $region12
      $region11: #{tpu_custom_call.1} parent=5 // pred_region
        %s234 = ssub.s32 %s22, 1
        // Predicated region
        $region13: #{tpu_custom_call.1} parent=11 // pred_check
          %p235 = pneg %p43
        $region14: #{tpu_custom_call.1} parent=11 // pred_check_branch
          %237 = sbr.rel (%p235) target = $region16
        $region15: #{tpu_custom_call.1} parent=11 // pred_region
          _
        $region16: #{tpu_custom_call.1} parent=11 // pred_fallthru
          _
        // Predicated region
        $region17: #{tpu_custom_call.1} parent=11 // pred_check
          %p238 = pneg %p64
        $region18: #{tpu_custom_call.1} parent=11 // pred_check_branch
          %240 = sbr.rel (%p238) target = $region20
        $region19: #{tpu_custom_call.1} parent=11 // pred_region
          _
        $region20: #{tpu_custom_call.1} parent=11 // pred_fallthru
          _
      $region12: #{tpu_custom_call.1} parent=5 // pred_fallthru
        _
      %p241 = scmp.lt.s32.totalorder %s22, 2
      // Predicated region
      $region21: #{tpu_custom_call.1} parent=5 // pred_check
        %p242 = pneg %p241
      $region22: #{tpu_custom_call.1} parent=5 // pred_check_branch
        %244 = sbr.rel (%p242) target = $region24
      $region23: #{tpu_custom_call.1} parent=5 // pred_region
        // Predicated region
        $region25: #{tpu_custom_call.1} parent=23 // pred_check
          %p245 = pneg %p84
        $region26: #{tpu_custom_call.1} parent=23 // pred_check_branch
          %247 = sbr.rel (%p245) target = $region28
        $region27: #{tpu_custom_call.1} parent=23 // pred_region
          %s248 = smul.u32 16, %s22
          %p249 = scmp.lt.s32.totalorder %s248, 31
          %s250 = scalar_select %p249, %s248, 31
          %s251 = smul.addr %s250, 8
          %s252 = scalar_lea.vmem %s2, %s251
          %s253 = smul.u32 16, %s22
        $region28: #{tpu_custom_call.1} parent=23 // pred_fallthru
          _
        // Predicated region
        $region29: #{tpu_custom_call.1} parent=23 // pred_check
          %p254 = pneg %p110
        $region30: #{tpu_custom_call.1} parent=23 // pred_check_branch
          %256 = sbr.rel (%p254) target = $region32
        $region31: #{tpu_custom_call.1} parent=23 // pred_region
          %s257 = smul.u32 16, %s22
          %p258 = scmp.lt.s32.totalorder %s257, 31
          %s259 = scalar_select %p258, %s257, 31
          %s260 = smul.addr %s259, 8
          %s261 = scalar_lea.vmem %s3, %s260
          %s262 = smul.u32 16, %s22
        $region32: #{tpu_custom_call.1} parent=23 // pred_fallthru
          _
        // Predicated region
        $region33: #{tpu_custom_call.1} parent=23 // pred_check
          %p263 = pneg %p136
        $region34: #{tpu_custom_call.1} parent=23 // pred_check_branch
          %265 = sbr.rel (%p263) target = $region36
        $region35: #{tpu_custom_call.1} parent=23 // pred_region
          %s266 = smul.u32 16, %s22
          %p267 = scmp.lt.s32.totalorder %s266, 31
          %s268 = scalar_select %p267, %s266, 31
          %s269 = smul.addr %s268, 8
          %s270 = scalar_lea.vmem %s4, %s269
          %s271 = smul.u32 16, %s22
        $region36: #{tpu_custom_call.1} parent=23 // pred_fallthru
          _
      $region24: #{tpu_custom_call.1} parent=5 // pred_fallthru
        _
      %p272 = scmp.le.s32.totalorder 1, %s22
      %p273 = scmp.lt.s32.totalorder %s22, 3
      %p274 = pnand %p272, %p273
      %p275 = pneg %p274
      // Predicated region
      $region37: #{tpu_custom_call.1} parent=5 // pred_check
        _
      $region38: #{tpu_custom_call.1} parent=5 // pred_check_branch
        %277 = sbr.rel (%p274) target = $region40
      $region39: #{tpu_custom_call.1} parent=5 // pred_region
        %s278 = ssub.s32 %s22, 1
        %p279 = pneg %p43
        %p280 = pneg %p40
        %p281 = pneg %p64
        %p282 = pneg %p61
        %s283 = smul.u32 16, %s27
        %p284 = scmp.lt.s32.totalorder %s283, 31
        %s285 = scalar_select %p284, %s283, 31
        %s286 = smul.addr %s285, 8
        %s287 = scalar_lea.vmem %s2, %s286
        %p288 = pneg %p90
        %p289 = pneg %p87
        %s290 = smul.u32 16, %s27
        %p291 = scmp.lt.s32.totalorder %s290, 31
        %s292 = scalar_select %p291, %s290, 31
        %s293 = smul.addr %s292, 8
        %s294 = scalar_lea.vmem %s3, %s293
        %p295 = pneg %p116
        %p296 = pneg %p113
        %s297 = smul.u32 16, %s27
        %p298 = scmp.lt.s32.totalorder %s297, 31
        %s299 = scalar_select %p298, %s297, 31
        %s300 = smul.addr %s299, 8
        %s301 = scalar_lea.vmem %s4, %s300
        %p302 = pneg %p142
        %p303 = pneg %p139
        %p304 = pneg %p168
        %p305 = pneg %p165
        %s306 = sand.u32 %s155, 1
        %s307 = scalar_lea.sflag [#allocation5], %s306
        %s308 = sand.u32 %s155, 1
        %s309 = smul.addr %s308, 4
        %s310 = scalar_lea.vmem [#allocation4], %s309
        %p311 = pneg %p194
        %p312 = pneg %p191
        %s313 = sand.u32 %s27, 1
        %s314 = scalar_lea.sflag [#allocation7], %s313
        %s315 = sand.u32 %s181, 1
        %s316 = scalar_lea.vmem [#allocation6], %s315
        %p317 = pneg %p220
        %p318 = pneg %p217
        %s319 = sand.u32 %s27, 1
        %s320 = scalar_lea.sflag [#allocation7], %s319
        %s321 = sand.u32 %s207, 1
        %s322 = smul.addr %s321, 16
        %s323 = scalar_lea.vmem [#allocation8], %s322
        %s324 = smul.u32 16, %s27
        %p325 = scmp.lt.s32.totalorder %s324, 31
        %s326 = scalar_select %p325, %s324, 31
        %s327 = smul.addr %s326, 8
        %s328 = scalar_lea.vmem %s2, %s327
        %s329 = smul.u32 16, %s27
        %s330 = smul.u32 16, %s27
        %p331 = scmp.lt.s32.totalorder %s330, 31
        %s332 = scalar_select %p331, %s330, 31
        %s333 = smul.addr %s332, 8
        %s334 = scalar_lea.vmem %s3, %s333
        %s335 = smul.u32 16, %s27
        %s336 = smul.u32 16, %s27
        %p337 = scmp.lt.s32.totalorder %s336, 31
        %s338 = scalar_select %p337, %s336, 31
        %s339 = smul.addr %s338, 8
        %s340 = scalar_lea.vmem %s4, %s339
        %s341 = smul.u32 16, %s27
        %v342 = vld [vmem:[%s340] sm:$0xff]
        %v343 = vld [vmem:[%s340 + $0x8] sm:$0xff]
        %v344 = vld [vmem:[%s340 + $0x10] sm:$0xff]
        %v345 = vld [vmem:[%s340 + $0x18] sm:$0xff]
        %v346 = vld [vmem:[%s340 + $0x20] sm:$0xff]
        %v347 = vld [vmem:[%s340 + $0x28] sm:$0xff]
        %v348 = vld [vmem:[%s340 + $0x30] sm:$0xff]
        %v349 = vld [vmem:[%s340 + $0x38] sm:$0xff]
        %v350 = vld [vmem:[%s340 + $0x40] sm:$0xff]
        %v351 = vld [vmem:[%s340 + $0x48] sm:$0xff]
        %v352 = vld [vmem:[%s340 + $0x50] sm:$0xff]
        %v353 = vld [vmem:[%s340 + $0x58] sm:$0xff]
        %v354 = vld [vmem:[%s340 + $0x60] sm:$0xff]
        %v355 = vld [vmem:[%s340 + $0x68] sm:$0xff]
        %v356 = vld [vmem:[%s340 + $0x70] sm:$0xff]
        %v357 = vld [vmem:[%s340 + $0x78] sm:$0xff]
        %358 = vxpose.xlu0.b32.start [1/16] %v342, 128
        %359 = vxpose.xlu0.b32.cont [2/16] %v343, 128
        %360 = vxpose.xlu0.b32.cont [3/16] %v344, 128
        %361 = vxpose.xlu0.b32.cont [4/16] %v345, 128
        %362 = vxpose.xlu0.b32.cont [5/16] %v346, 128
        %363 = vxpose.xlu0.b32.cont [6/16] %v347, 128
        %364 = vxpose.xlu0.b32.cont [7/16] %v348, 128
        %365 = vxpose.xlu0.b32.cont [8/16] %v349, 128
        %366 = vxpose.xlu0.b32.cont [9/16] %v350, 128
        %367 = vxpose.xlu0.b32.cont [10/16] %v351, 128
        %368 = vxpose.xlu0.b32.cont [11/16] %v352, 128
        %369 = vxpose.xlu0.b32.cont [12/16] %v353, 128
        %370 = vxpose.xlu0.b32.cont [13/16] %v354, 128
        %371 = vxpose.xlu0.b32.cont [14/16] %v355, 128
        %372 = vxpose.xlu0.b32.cont [15/16] %v356, 128
        %373 = vxpose.xlu0.b32.end [16/16] %v357, 128
        %v374 = vpop.trf.xlu0
        %v375 = vpop.trf.xlu0
        %v376 = vpop.trf.xlu0
        %v377 = vpop.trf.xlu0
        %v378 = vpop.trf.xlu0
        %v379 = vpop.trf.xlu0
        %v380 = vpop.trf.xlu0
        %v381 = vpop.trf.xlu0
        %v382 = vpop.trf.xlu0
        %v383 = vpop.trf.xlu0
        %v384 = vpop.trf.xlu0
        %v385 = vpop.trf.xlu0
        %v386 = vpop.trf.xlu0
        %v387 = vpop.trf.xlu0
        %v388 = vpop.trf.xlu0
        %v389 = vpop.trf.xlu0
        %v390 = vld [vmem:[%s334] sm:$0xff]
        %v391 = vld [vmem:[%s334 + $0x8] sm:$0xff]
        %v392 = vld [vmem:[%s334 + $0x10] sm:$0xff]
        %v393 = vld [vmem:[%s334 + $0x18] sm:$0xff]
        %v394 = vld [vmem:[%s334 + $0x20] sm:$0xff]
        %v395 = vld [vmem:[%s334 + $0x28] sm:$0xff]
        %v396 = vld [vmem:[%s334 + $0x30] sm:$0xff]
        %v397 = vld [vmem:[%s334 + $0x38] sm:$0xff]
        %v398 = vld [vmem:[%s334 + $0x40] sm:$0xff]
        %v399 = vld [vmem:[%s334 + $0x48] sm:$0xff]
        %v400 = vld [vmem:[%s334 + $0x50] sm:$0xff]
        %v401 = vld [vmem:[%s334 + $0x58] sm:$0xff]
        %v402 = vld [vmem:[%s334 + $0x60] sm:$0xff]
        %v403 = vld [vmem:[%s334 + $0x68] sm:$0xff]
        %v404 = vld [vmem:[%s334 + $0x70] sm:$0xff]
        %v405 = vld [vmem:[%s334 + $0x78] sm:$0xff]
        %406 = vxpose.xlu0.b32.start [1/16] %v390, 128
        %407 = vxpose.xlu0.b32.cont [2/16] %v391, 128
        %408 = vxpose.xlu0.b32.cont [3/16] %v392, 128
        %409 = vxpose.xlu0.b32.cont [4/16] %v393, 128
        %410 = vxpose.xlu0.b32.cont [5/16] %v394, 128
        %411 = vxpose.xlu0.b32.cont [6/16] %v395, 128
        %412 = vxpose.xlu0.b32.cont [7/16] %v396, 128
        %413 = vxpose.xlu0.b32.cont [8/16] %v397, 128
        %414 = vxpose.xlu0.b32.cont [9/16] %v398, 128
        %415 = vxpose.xlu0.b32.cont [10/16] %v399, 128
        %416 = vxpose.xlu0.b32.cont [11/16] %v400, 128
        %417 = vxpose.xlu0.b32.cont [12/16] %v401, 128
        %418 = vxpose.xlu0.b32.cont [13/16] %v402, 128
        %419 = vxpose.xlu0.b32.cont [14/16] %v403, 128
        %420 = vxpose.xlu0.b32.cont [15/16] %v404, 128
        %421 = vxpose.xlu0.b32.end [16/16] %v405, 128
        %v422 = vpop.trf.xlu0
        %v423 = vpop.trf.xlu0
        %v424 = vpop.trf.xlu0
        %v425 = vpop.trf.xlu0
        %v426 = vpop.trf.xlu0
        %v427 = vpop.trf.xlu0
        %v428 = vpop.trf.xlu0
        %v429 = vpop.trf.xlu0
        %v430 = vpop.trf.xlu0
        %v431 = vpop.trf.xlu0
        %v432 = vpop.trf.xlu0
        %v433 = vpop.trf.xlu0
        %v434 = vpop.trf.xlu0
        %v435 = vpop.trf.xlu0
        %v436 = vpop.trf.xlu0
        %v437 = vpop.trf.xlu0
        %v438 = vld [vmem:[%s328] sm:$0xff]
        %v439 = vld [vmem:[%s328 + $0x8] sm:$0xff]
        %v440 = vld [vmem:[%s328 + $0x10] sm:$0xff]
        %v441 = vld [vmem:[%s328 + $0x18] sm:$0xff]
        %v442 = vld [vmem:[%s328 + $0x20] sm:$0xff]
        %v443 = vld [vmem:[%s328 + $0x28] sm:$0xff]
        %v444 = vld [vmem:[%s328 + $0x30] sm:$0xff]
        %v445 = vld [vmem:[%s328 + $0x38] sm:$0xff]
        %v446 = vld [vmem:[%s328 + $0x40] sm:$0xff]
        %v447 = vld [vmem:[%s328 + $0x48] sm:$0xff]
        %v448 = vld [vmem:[%s328 + $0x50] sm:$0xff]
        %v449 = vld [vmem:[%s328 + $0x58] sm:$0xff]
        %v450 = vld [vmem:[%s328 + $0x60] sm:$0xff]
        %v451 = vld [vmem:[%s328 + $0x68] sm:$0xff]
        %v452 = vld [vmem:[%s328 + $0x70] sm:$0xff]
        %v453 = vld [vmem:[%s328 + $0x78] sm:$0xff]
        %454 = vxpose.xlu0.b32.start [1/16] %v438, 128
        %455 = vxpose.xlu0.b32.cont [2/16] %v439, 128
        %456 = vxpose.xlu0.b32.cont [3/16] %v440, 128
        %457 = vxpose.xlu0.b32.cont [4/16] %v441, 128
        %458 = vxpose.xlu0.b32.cont [5/16] %v442, 128
        %459 = vxpose.xlu0.b32.cont [6/16] %v443, 128
        %460 = vxpose.xlu0.b32.cont [7/16] %v444, 128
        %461 = vxpose.xlu0.b32.cont [8/16] %v445, 128
        %462 = vxpose.xlu0.b32.cont [9/16] %v446, 128
        %463 = vxpose.xlu0.b32.cont [10/16] %v447, 128
        %464 = vxpose.xlu0.b32.cont [11/16] %v448, 128
        %465 = vxpose.xlu0.b32.cont [12/16] %v449, 128
        %466 = vxpose.xlu0.b32.cont [13/16] %v450, 128
        %467 = vxpose.xlu0.b32.cont [14/16] %v451, 128
        %468 = vxpose.xlu0.b32.cont [15/16] %v452, 128
        %469 = vxpose.xlu0.b32.end [16/16] %v453, 128
        %v470 = vpop.trf.xlu0
        %v471 = vpop.trf.xlu0
        %v472 = vpop.trf.xlu0
        %v473 = vpop.trf.xlu0
        %v474 = vpop.trf.xlu0
        %v475 = vpop.trf.xlu0
        %v476 = vpop.trf.xlu0
        %v477 = vpop.trf.xlu0
        %v478 = vpop.trf.xlu0
        %v479 = vpop.trf.xlu0
        %v480 = vpop.trf.xlu0
        %v481 = vpop.trf.xlu0
        %v482 = vpop.trf.xlu0
        %v483 = vpop.trf.xlu0
        %v484 = vpop.trf.xlu0
        %v485 = vpop.trf.xlu0
        %vm488 = vcmask 1040384
        %v489 = vrot.slane %v374, 7
        %v490 = vrot.slane %v375, 7
        %v491 = vsel %vm488, %v489, %v490
        %v494 = vsub.f32 %v374, %v489
        %v495 = vsub.f32 %v375, %v491
        %v496 = vadd.f32 %v374, %v489
        %v497 = vadd.f32 %v375, %v491
        %v498 = vmul.f32 %v496, 0.5
        %v499 = vmul.f32 %v497, 0.5
        %v502 = vrot.slane %v422, 7
        %v503 = vrot.slane %v423, 7
        %v504 = vsel %vm488, %v502, %v503
        %v507 = vadd.f32 %v422, %v502
        %v508 = vadd.f32 %v423, %v504
        %v509 = vmul.f32 %v507, 0.5
        %v510 = vmul.f32 %v508, 0.5
        %v511 = vsub.f32 %v509, 1.0
        %v512 = vsub.f32 %v510, 1.0
        %v513 = vand.u32 2147483647, %v511
        %v514 = vand.u32 2147483647, %v512
        %v515 = vsub.f32 0.0, %v513
        %v516 = vsub.f32 0.0, %v514
        %v517 = vmul.f32 %v515, 1.442695
        %v518 = vpow.pop %v517
        %v519 = vmul.f32 %v516, 1.442695
        %v520 = vpow.pop %v519
        %vm521 = vcmp.gt.f32.partialorder %v518, 0.0001
        %vm522 = vcmp.gt.f32.partialorder %v520, 0.0001
        %v523 = vadd.f32 %v518, 1.0
        %v524 = vadd.f32 %v520, 1.0
        %v525 = vlog2.pop %v523
        %v526 = vmul.f32 %v525, 0.6931472
        %v527 = vlog2.pop %v524
        %v528 = vmul.f32 %v527, 0.6931472
        %v529 = vmul.f32 %v518, 0.5
        %v530 = vmul.f32 %v520, 0.5
        %v531 = vsub.f32 1.0, %v529
        %v532 = vsub.f32 1.0, %v530
        %v533 = vmul.f32 %v518, %v531
        %v534 = vmul.f32 %v520, %v532
        %v535 = vsel %vm521, %v526, %v533
        %v536 = vsel %vm522, %v528, %v534
        %v537 = vmax.f32 %v511, 0.0
        %v538 = vmax.f32 %v512, 0.0
        %v539 = vadd.f32 %v537, %v535
        %v540 = vadd.f32 %v538, %v536
        %v541 = vmul.f32 %v539, %v494
        %v542 = vmul.f32 %v540, %v495
        %v543 = vsub.f32 0.0, %v541
        %v544 = vsub.f32 0.0, %v542
        %v545 = vmul.f32 %v543, 1.442695
        %v546 = vpow.pop %v545
        %v547 = vmul.f32 %v544, 1.442695
        %v548 = vpow.pop %v547
        %v549 = vsub.f32 1.0, %v546
        %v550 = vsub.f32 1.0, %v548
        %v551 = vsub.f32 1.0, %v549
        %v552 = vsub.f32 1.0, %v550
        %v553 = vadd.f32 %v551, 1e-10
        %v554 = vadd.f32 %v552, 1e-10
        %v555 = vsel %vm488, 1.0, %v553
        %v558 = vrot.slane %v555, 7
        %v559 = vrot.slane %v554, 7
        %v560 = vsel %vm488, %v558, %v559
        %v563 = vmul.f32 %v553, %v558
        %v564 = vmul.f32 %v554, %v560
        %v567 = vrot.slane %v563, 7
        %v568 = vrot.slane %v564, 7
        %v569 = vsel %vm488, %v567, %v568
        %vm571 = vcmask 1041408
        %v572 = vsel %vm571, 1.0, %v567
        %v574 = vrot.slane %v572, 7
        %v575 = vrot.slane %v569, 7
        %v576 = vsel %vm488, %v574, %v575
        %v579 = vmul.f32 %v563, %v574
        %v580 = vmul.f32 %v564, %v576
        %vm583 = vcmask 1042432
        %v584 = vrot.slane %v579, 5
        %v585 = vrot.slane %v580, 5
        %v586 = vsel %vm583, %v584, %v585
        %vm588 = vcmask 1043456
        %v589 = vsel %vm588, 1.0, %v584
        %v591 = vrot.slane %v589, 7
        %v592 = vrot.slane %v586, 7
        %v593 = vsel %vm488, %v591, %v592
        %v596 = vmul.f32 %v579, %v591
        %v597 = vmul.f32 %v580, %v593
        %v599 = vrot.slane %v596, 1
        %v601 = vrot.slane 1.0, 7
        %v602 = vrot.slane %v599, 7
        %v603 = vsel %vm488, %v601, %v602
        %v606 = vmul.f32 %v596, %v601
        %v607 = vmul.f32 %v597, %v603
        %v608 = vsel %vm488, 1.0, %v606
        %v611 = vrot.slane %v608, 7
        %v612 = vrot.slane %v607, 7
        %v613 = vsel %vm488, %v611, %v612
        %v616 = vmul.f32 %v549, %v611
        %v617 = vmul.f32 %v550, %v613
        %vm620 = vcmask 1046528
        %v621 = vrot.slane %v616, 1
        %v622 = vrot.slane %v617, 1
        %v623 = vsel %vm620, %v621, %v622
        %v626 = vsel %vm620, %v622, 0.0
        %v627 = vadd.f32 %v623, %v626
        %v628 = vrot.slane %v627, 4
        %v629 = vadd.f32 %v627, %v628
        %v630 = vrot.slane %v629, 2
        %v631 = vadd.f32 %v629, %v630
        %v632 = vrot.slane %v631, 1
        %v633 = vadd.f32 %v631, %v632
        %v634 = vmul.f32 %v616, %v498
        %v635 = vmul.f32 %v617, %v499
        %v638 = vrot.slane %v634, 1
        %v639 = vrot.slane %v635, 1
        %v640 = vsel %vm620, %v638, %v639
        %v643 = vsel %vm620, %v639, 0.0
        %v644 = vadd.f32 %v640, %v643
        %v645 = vrot.slane %v644, 4
        %v646 = vadd.f32 %v644, %v645
        %v647 = vrot.slane %v646, 2
        %v648 = vadd.f32 %v646, %v647
        %v649 = vrot.slane %v648, 1
        %v650 = vadd.f32 %v648, %v649
        %v651 = vrcp.pop %v633
        %v652 = vmul.f32 %v650, %v651
        %vm653 = vcmp.ne.f32.partialorder %v652, %v652
        %v654 = vsel %vm653, inf, %v652
        %s655 = sld [smem:[#allocation2]]
        %s656 = sld [smem:[#allocation3]]
        %v657 = vstv %s655
        %v658 = vmax.f32 %v657, %v654
        %v659 = vstv %s656
        %v660 = vmin.f32 %v659, %v658
        %661 = vst [vmem:[%s316] sm:$0x1] %v660
        %v662 = vsel %vm488, 0.0, %v616
        %v665 = vrot.slane %v662, 1
        %v666 = vsel %vm620, %v665, %v622
        %v667 = vrot.slane 0.0, 1
        %v668 = vsel %vm620, %v622, %v667
        %v671 = vadd.f32 %v662, %v666
        %v672 = vadd.f32 %v617, %v668
        %v673 = vmul.f32 %v671, 0.5
        %v674 = vmul.f32 %v672, 0.5
        %v675 = vlaneseq
        %v676 = vshrl.u32 %v675, 7
        %v677 = vsub.s32 0, %v676
        %v678 = vrot.slane %v673, %v677
        %v679 = vmul.f32 %v678, %v470
        %v680 = vlaneseq
        %v681 = vshrl.u32 %v680, 7
        %v682 = vsub.s32 1, %v681
        %v683 = vrot.slane %v673, %v682
        %v684 = vmul.f32 %v683, %v470
        %v686 = vrot.slane %v684, 3
        %v688 = vadd.f32 %v679, %v686
        %v689 = vlaneseq
        %v690 = vshrl.u32 %v689, 7
        %v691 = vsub.s32 2, %v690
        %v692 = vrot.slane %v673, %v691
        %v693 = vmul.f32 %v692, %v470
        %v694 = vmul.f32 %v692, %v471
        %v697 = vrot.slane %v693, 6
        %v698 = vrot.slane %v694, 6
        %v699 = vsel %vm571, %v697, %v698
        %v701 = vadd.f32 %v688, %v699
        %v702 = vlaneseq
        %v703 = vshrl.u32 %v702, 7
        %v704 = vsub.s32 3, %v703
        %v705 = vrot.slane %v673, %v704
        %v706 = vmul.f32 %v705, %v471
        %v708 = vrot.slane %v706, 1
        %v710 = vadd.f32 %v701, %v708
        %v711 = vlaneseq
        %v712 = vshrl.u32 %v711, 7
        %v713 = vsub.s32 4, %v712
        %v714 = vrot.slane %v673, %v713
        %v715 = vmul.f32 %v714, %v471
        %v717 = vrot.slane %v715, 4
        %v719 = vadd.f32 %v710, %v717
        %v720 = vlaneseq
        %v721 = vshrl.u32 %v720, 7
        %v722 = vsub.s32 5, %v721
        %v723 = vrot.slane %v673, %v722
        %v724 = vmul.f32 %v723, %v471
        %v725 = vmul.f32 %v723, %v472
        %v728 = vrot.slane %v724, 7
        %v729 = vrot.slane %v725, 7
        %v730 = vsel %vm488, %v728, %v729
        %v732 = vadd.f32 %v719, %v730
        %v733 = vlaneseq
        %v734 = vshrl.u32 %v733, 7
        %v735 = vsub.s32 6, %v734
        %v736 = vrot.slane %v673, %v735
        %v737 = vmul.f32 %v736, %v472
        %v739 = vrot.slane %v737, 2
        %v741 = vadd.f32 %v732, %v739
        %v742 = vlaneseq
        %v743 = vshrl.u32 %v742, 7
        %v744 = vsub.s32 7, %v743
        %v745 = vrot.slane %v673, %v744
        %v746 = vmul.f32 %v745, %v472
        %v748 = vrot.slane %v746, 5
        %v750 = vadd.f32 %v741, %v748
        %v751 = vlaneseq
        %v752 = vshrl.u32 %v751, 7
        %v753 = vsub.s32 0, %v752
        %v754 = vrot.slane %v674, %v753
        %v755 = vmul.f32 %v754, %v473
        %v756 = vadd.f32 %v750, %v755
        %v757 = vlaneseq
        %v758 = vshrl.u32 %v757, 7
        %v759 = vsub.s32 1, %v758
        %v760 = vrot.slane %v674, %v759
        %v761 = vmul.f32 %v760, %v473
        %v763 = vrot.slane %v761, 3
        %v765 = vadd.f32 %v756, %v763
        %v766 = vlaneseq
        %v767 = vshrl.u32 %v766, 7
        %v768 = vsub.s32 2, %v767
        %v769 = vrot.slane %v674, %v768
        %v770 = vmul.f32 %v769, %v473
        %v771 = vmul.f32 %v769, %v474
        %v774 = vrot.slane %v770, 6
        %v775 = vrot.slane %v771, 6
        %v776 = vsel %vm571, %v774, %v775
        %v778 = vadd.f32 %v765, %v776
        %v779 = vlaneseq
        %v780 = vshrl.u32 %v779, 7
        %v781 = vsub.s32 3, %v780
        %v782 = vrot.slane %v674, %v781
        %v783 = vmul.f32 %v782, %v474
        %v785 = vrot.slane %v783, 1
        %v787 = vadd.f32 %v778, %v785
        %v788 = vlaneseq
        %v789 = vshrl.u32 %v788, 7
        %v790 = vsub.s32 4, %v789
        %v791 = vrot.slane %v674, %v790
        %v792 = vmul.f32 %v791, %v474
        %v794 = vrot.slane %v792, 4
        %v796 = vadd.f32 %v787, %v794
        %v797 = vlaneseq
        %v798 = vshrl.u32 %v797, 7
        %v799 = vsub.s32 5, %v798
        %v800 = vrot.slane %v674, %v799
        %v801 = vmul.f32 %v800, %v474
        %v802 = vmul.f32 %v800, %v475
        %v805 = vrot.slane %v801, 7
        %v806 = vrot.slane %v802, 7
        %v807 = vsel %vm488, %v805, %v806
        %v809 = vadd.f32 %v796, %v807
        %v810 = vlaneseq
        %v811 = vshrl.u32 %v810, 7
        %v812 = vsub.s32 6, %v811
        %v813 = vrot.slane %v674, %v812
        %v814 = vmul.f32 %v813, %v475
        %v816 = vrot.slane %v814, 2
        %v818 = vadd.f32 %v809, %v816
        %v819 = vlaneseq
        %v820 = vshrl.u32 %v819, 7
        %v821 = vsub.s32 7, %v820
        %v822 = vrot.slane %v674, %v821
        %v823 = vmul.f32 %v822, %v475
        %v825 = vrot.slane %v823, 5
        %v827 = vadd.f32 %v818, %v825
        %v828 = vmul.f32 %v827, 2.0
        %v829 = vsub.f32 %v828, 1.0
        %830 = vst [vmem:[%s310] sm:$0x7] %v829
        %831 = vst [vmem:[%s323 - $0x1] sm:$0xfe] %v616
        %832 = vst [vmem:[%s323 + $0x7] sm:$0xff] %v617
        %s833 = sand.u32 %s155, 1
        %s834 = scalar_lea.sflag [#allocation5], %s833
        %s835 = sand.u32 %s155, 1
        %s836 = smul.addr %s835, 4
        %s837 = scalar_lea.vmem [#allocation4], %s836
        %s838 = sand.u32 %s27, 1
        %s839 = scalar_lea.sflag [#allocation7], %s838
        %s840 = sand.u32 %s181, 1
        %s841 = scalar_lea.vmem [#allocation6], %s840
        %s842 = sand.u32 %s27, 1
        %s843 = scalar_lea.sflag [#allocation7], %s842
        %s844 = sand.u32 %s207, 1
        %s845 = smul.addr %s844, 16
        %s846 = scalar_lea.vmem [#allocation8], %s845
        // Predicated region
        $region41: #{tpu_custom_call.1} parent=39 // pred_check
          %p847 = pneg %p165
        $region42: #{tpu_custom_call.1} parent=39 // pred_check_branch
          %849 = sbr.rel (%p847) target = $region44
        $region43: #{tpu_custom_call.1} parent=39 // pred_region
          %s851 = ssub.s32 64, 64
          %852 = vsyncadd %s834, %s851
          %s853 = smul.addr %s27, 64
          %s854 = scalar_lea.hbm %s5, %s853
          %s856 = sshll.u32 %s837, 4
          %s857 = int_to_ptr.vmem [resolvable:$true] %s856
          %859 = dma.vmem_to_hbm [thread:$0]  %s857, 64, %s854, %s834
        $region44: #{tpu_custom_call.1} parent=39 // pred_fallthru
          _
        // Predicated region
        $region45: #{tpu_custom_call.1} parent=39 // pred_check
          %p860 = pneg %p191
        $region46: #{tpu_custom_call.1} parent=39 // pred_check_branch
          %862 = sbr.rel (%p860) target = $region48
        $region47: #{tpu_custom_call.1} parent=39 // pred_region
          %s864 = ssub.s32 16, 16
          %865 = vsyncadd %s839, %s864
          %s866 = smul.addr %s27, 16
          %s867 = scalar_lea.hbm %s6, %s866
          %s869 = sshll.u32 %s841, 4
          %s870 = int_to_ptr.vmem [resolvable:$true] %s869
          %872 = dma.vmem_to_hbm [thread:$0]  %s870, 16, %s867, %s839
        $region48: #{tpu_custom_call.1} parent=39 // pred_fallthru
          _
        // Predicated region
        $region49: #{tpu_custom_call.1} parent=39 // pred_check
          %p873 = pneg %p217
        $region50: #{tpu_custom_call.1} parent=39 // pred_check_branch
          %875 = sbr.rel (%p873) target = $region52
        $region51: #{tpu_custom_call.1} parent=39 // pred_region
          %s877 = ssub.s32 256, 256
          %878 = vsyncadd %s843, %s877
          %s879 = smul.addr %s27, 128
          %s880 = scalar_lea.hbm %s7, %s879
          %s881 = sshll.u32 %s846, 4
          %s882 = int_to_ptr.vmem [resolvable:$true] %s881
          %887 = dma.vmem_to_hbm [thread:$0]  %s882, 256, %s880, %s843, 128, 256, 8
        $region52: #{tpu_custom_call.1} parent=39 // pred_fallthru
          _
      $region40: #{tpu_custom_call.1} parent=5 // pred_fallthru
        _
      %p888 = scmp.le.s32.totalorder 2, %s22
      // Predicated region
      $region53: #{tpu_custom_call.1} parent=5 // pred_check
        %p889 = pneg %p888
      $region54: #{tpu_custom_call.1} parent=5 // pred_check_branch
        %891 = sbr.rel (%p889) target = $region56
      $region55: #{tpu_custom_call.1} parent=5 // pred_region
        %s892 = ssub.s32 %s22, 2
        // Predicated region
        $region57: #{tpu_custom_call.1} parent=55 // pred_check
          %p893 = pneg %p171
        $region58: #{tpu_custom_call.1} parent=55 // pred_check_branch
          %895 = sbr.rel (%p893) target = $region60
        $region59: #{tpu_custom_call.1} parent=55 // pred_region
          %s896 = sand.u32 %s156, 1
          %s897 = scalar_lea.sflag [#allocation5], %s896
          %s898 = sand.u32 %s156, 1
          %s899 = smul.addr %s898, 4
          %s900 = scalar_lea.vmem [#allocation4], %s899
          %901 = dma.done %s897, 64
        $region60: #{tpu_custom_call.1} parent=55 // pred_fallthru
          _
        // Predicated region
        $region61: #{tpu_custom_call.1} parent=55 // pred_check
          %p902 = pneg %p197
        $region62: #{tpu_custom_call.1} parent=55 // pred_check_branch
          %904 = sbr.rel (%p902) target = $region64
        $region63: #{tpu_custom_call.1} parent=55 // pred_region
          %s905 = sand.u32 %s28, 1
          %s906 = scalar_lea.sflag [#allocation7], %s905
          %s907 = sand.u32 %s182, 1
          %s908 = scalar_lea.vmem [#allocation6], %s907
          %909 = dma.done %s906, 16
        $region64: #{tpu_custom_call.1} parent=55 // pred_fallthru
          _
        // Predicated region
        $region65: #{tpu_custom_call.1} parent=55 // pred_check
          %p910 = pneg %p223
        $region66: #{tpu_custom_call.1} parent=55 // pred_check_branch
          %912 = sbr.rel (%p910) target = $region68
        $region67: #{tpu_custom_call.1} parent=55 // pred_region
          %s913 = sand.u32 %s28, 1
          %s914 = scalar_lea.sflag [#allocation7], %s913
          %s915 = sand.u32 %s208, 1
          %s916 = smul.addr %s915, 16
          %s917 = scalar_lea.vmem [#allocation8], %s916
          %918 = dma.done %s914, 256
        $region68: #{tpu_custom_call.1} parent=55 // pred_fallthru
          _
      $region56: #{tpu_custom_call.1} parent=5 // pred_fallthru
        _
    $region6: #{tpu_custom_call.1} parent=1 // loop_footer
      %s26 = sadd.s32 1, %s22
    $region7: #{tpu_custom_call.1} parent=1 // loop_footer_branch
      %21 = sbr.rel target = $region3
    $region8: #{tpu_custom_call.1} parent=1 // loop_exit
      _
    %919 = vsyncpa [#allocation5], 1
    %s920 = scalar_lea.sflag [#allocation5], 1
    %921 = vsyncpa %s920, 1
    %922 = vsyncpa [#allocation7], 1
    %s923 = scalar_lea.sflag [#allocation7], 1
    %924 = vsyncpa %s923, 1

</llo_original>
